<compile_context>
chip_gen: v7x
topology: tpu7x:2x2x1
jax: 0.10.0
libtpu: 0.0.40
codegen_flags: <defaults>
</compile_context>

<pallas_src>
import functools
import math

import jax
import jax.numpy as jnp
from jax.experimental import pallas as pl
from jax.experimental.pallas import tpu as pltpu


# MXU operand dtype for the projection matmuls (accumulation is always f32).
# Use jnp.float32 for exact-f32 reference parity.
MXU_DTYPE = jnp.bfloat16


def _round_up(x, m):
    return (x + m - 1) // m * m


def _tpu_vmem_bytes():
    try:
        info = pltpu.get_tpu_info()
        return int(getattr(info, "vmem_capacity_bytes", 64 * 1024 * 1024))
    except Exception:
        return 64 * 1024 * 1024


_VMEM_BYTES = _tpu_vmem_bytes()
# 2048-row projection tiles on v5e/v6e (128 MiB VMEM), 1024 on v7x (64 MiB).
LINEAR_BLOCK_ROWS = 2048 if _VMEM_BYTES >= 128 * 1024 * 1024 else 1024
# Raise the scoped-VMEM limit (v5e default is only 16 MiB), but never request
# more than ~3/4 of physical VMEM.
_VMEM_LIMIT = int(min(64 * 1024 * 1024, (_VMEM_BYTES * 3) // 4))


# ---------------------------------------------------------------------------
# Kernel 1: tiled linear projection  y = x @ W + b
#   grid = (row_tiles,); weight & bias blocks map to a constant index so they
#   stay VMEM-resident across row tiles.
# ---------------------------------------------------------------------------
def _linear_kernel(x_ref, w_ref, b_ref, o_ref):
    acc = jnp.dot(x_ref[...], w_ref[...], preferred_element_type=jnp.float32)
    o_ref[...] = (acc + b_ref[...]).astype(o_ref.dtype)


def linear_pallas(x2d, w, b, *, block_rows=None):
    """x2d: (N, Din), w: (Din, Dout), b: (Dout,) -> (N, Dout) float32."""
    n, din = x2d.shape
    dout = w.shape[1]
    block_rows = block_rows or LINEAR_BLOCK_ROWS
    tm = min(block_rows, _round_up(n, 16))
    n_pad = _round_up(n, tm)
    x_p = x2d.astype(MXU_DTYPE)
    if n_pad != n:
        x_p = jnp.pad(x_p, ((0, n_pad - n), (0, 0)))
    out = pl.pallas_call(
        _linear_kernel,
        out_shape=jax.ShapeDtypeStruct((n_pad, dout), jnp.float32),
        grid=(n_pad // tm,),
        in_specs=[
            pl.BlockSpec((tm, din), lambda i: (i, 0)),
            pl.BlockSpec((din, dout), lambda i: (0, 0)),   # resident weight
            pl.BlockSpec((1, dout), lambda i: (0, 0)),     # resident bias
        ],
        out_specs=pl.BlockSpec((tm, dout), lambda i: (i, 0)),
        compiler_params=pltpu.CompilerParams(
            dimension_semantics=("parallel",),
            vmem_limit_bytes=_VMEM_LIMIT),
    )(x_p, w.astype(MXU_DTYPE), b.reshape(1, dout).astype(jnp.float32))
    return out[:n]


# ---------------------------------------------------------------------------
# Kernel 2: time-delay aggregation (AutoCorrelation inference aggregation)
#
#   agg[b, t, c] = sum_i  w[b, i] * values[b, (t + delay[b, i]) % L, c]
#
# Each delay is a circular time shift realized as a contiguous dynamic-offset
# slice of a doubled [v; v] VMEM buffer (no modulo, no LxL matmul).  delays and
# softmax weights live in SMEM via scalar prefetch (flat 1-D).  Contributions
# are accumulated in f32 vregs; the output block is written exactly once (bf16).
# ---------------------------------------------------------------------------
def _time_delay_agg_kernel(delay_ref, wgt_ref, v_ref, o_ref, vv_ref, *, top_k):
    b = pl.program_id(0)
    L = v_ref.shape[0]

    vf = v_ref[...].astype(jnp.float32)          # (L, tc)
    vv_ref[pl.ds(0, L), :] = vf                  # doubled buffer: the rolled
    vv_ref[pl.ds(L, L), :] = vf                  # value at delay d is vv[d:d+L]

    acc = None
    for i in range(top_k):                       # top_k is tiny and static
        d = delay_ref[b * top_k + i]             # int32 scalar from SMEM
        w_i = wgt_ref[b * top_k + i]             # f32 softmax weight from SMEM
        contrib = w_i * vv_ref[pl.ds(d, L), :]
        acc = contrib if acc is None else acc + contrib
    o_ref[...] = acc.astype(o_ref.dtype)         # single store


def _pick_channel_tile(hd):
    if hd <= 512:
        return hd
    for tc in (512, 384, 256, 128):
        if hd % tc == 0:
            return tc
    return hd


def time_delay_agg_pallas(values_flat, delay, weights, top_k):
    """values_flat: (B, L, HD) bf16, delay: (B*K,) int32, weights: (B*K,) f32."""
    B, L, HD = values_flat.shape
    tc = _pick_channel_tile(HD)
    kernel = functools.partial(_time_delay_agg_kernel, top_k=top_k)
    return pl.pallas_call(
        kernel,
        out_shape=jax.ShapeDtypeStruct((B, L, HD), values_flat.dtype),
        grid_spec=pltpu.PrefetchScalarGridSpec(
            num_scalar_prefetch=2,               # delay + weights -> SMEM
            grid=(B, HD // tc),
            in_specs=[pl.BlockSpec((None, L, tc), lambda b, j, *_: (b, 0, j))],
            out_specs=pl.BlockSpec((None, L, tc), lambda b, j, *_: (b, 0, j)),
            scratch_shapes=[pltpu.VMEM((2 * L, tc), jnp.float32)],
        ),
        compiler_params=pltpu.CompilerParams(
            dimension_semantics=("parallel", "parallel")),
    )(delay, weights, values_flat)


# ---------------------------------------------------------------------------
# Full layer forward: projections -> inner correlation aggregation -> out proj.
# ---------------------------------------------------------------------------
def attention_layer_forward(params, queries, keys, values, n_heads, factor=1,
                            self_attention=False):
    B, L, d_model = queries.shape
    _, S, _ = keys.shape
    H = n_heads
    HE = params["Wq"].shape[1]                   # H * d_keys
    HD = params["Wv"].shape[1]                   # H * d_values

    if self_attention and L == S:
        # One matmul against concatenated [Wq | Wk | Wv]: activations are read
        # once and the MXU N dimension triples per step.
        w_cat = jnp.concatenate([params["Wq"], params["Wk"], params["Wv"]], axis=1)
        b_cat = jnp.concatenate([params["bq"], params["bk"], params["bv"]], axis=0)
        qkv = linear_pallas(queries.reshape(B * L, d_model), w_cat, b_cat)
        q = qkv[:, :HE].reshape(B, L, H, -1)
        k = qkv[:, HE:2 * HE].reshape(B, S, H, -1)
        v = qkv[:, 2 * HE:].reshape(B, S, H, -1)
    else:
        q = linear_pallas(queries.reshape(B * L, d_model),
                          params["Wq"], params["bq"]).reshape(B, L, H, -1)
        k = linear_pallas(keys.reshape(B * S, d_model),
                          params["Wk"], params["bk"]).reshape(B, S, H, -1)
        v = linear_pallas(values.reshape(B * S, d_model),
                          params["Wv"], params["bv"]).reshape(B, S, H, -1)

    E = q.shape[-1]
    D = v.shape[-1]

    # Align key/value length to the query length (matches AutoCorrelation.forward).
    if L > S:
        k = jnp.concatenate([k, jnp.zeros((B, L - S, H, E), k.dtype)], axis=1)
        v = jnp.concatenate([v, jnp.zeros((B, L - S, H, D), v.dtype)], axis=1)
    else:
        k = k[:, :L]
        v = v[:, :L]

    # Period-based dependencies via FFT cross-correlation.
    # TODO(synk): rfft/irfft have no Pallas/Mosaic equivalent; kept as jnp.fft glue.
    # The head/channel mean is applied BEFORE the irfft (linearity), so the
    # inverse FFT is only (B, L//2+1) -> (B, Lc) instead of (B, *, H, E).
    qf = jnp.fft.rfft(q.astype(jnp.float32), axis=1)
    kf = jnp.fft.rfft(k.astype(jnp.float32), axis=1)
    spec_mean = jnp.mean(qf * jnp.conj(kf), axis=(2, 3))    # (B, L//2+1) complex
    mean_value = jnp.fft.irfft(spec_mean, axis=1)            # (B, Lc), Lc = 2*(L//2)

    # Top-k delays (data-dependent selection stays in JAX; results feed the
    # Pallas kernel through SMEM scalar prefetch).
    top_k = max(1, int(factor * math.log(L)))
    weights, delay = jax.lax.top_k(mean_value, top_k)        # (B, K)
    tmp_corr = jax.nn.softmax(weights, axis=-1)               # (B, K)

    # Time-delay aggregation (Pallas kernel); values carried in bf16.
    v_flat = v.reshape(B, L, H * D).astype(jnp.bfloat16)
    agg = time_delay_agg_pallas(
        v_flat,
        delay.reshape(-1).astype(jnp.int32),
        tmp_corr.reshape(-1).astype(jnp.float32),
        top_k)                                                # (B, L, H*D) bf16

    out = linear_pallas(agg.reshape(B * L, H * D), params["Wo"], params["bo"])
    return out.reshape(B, L, d_model), None   # output_attention=False -> attn None


# ---------------------------------------------------------------------------
# Deterministic parameter initialization (nn.Linear-shaped weights).
# ---------------------------------------------------------------------------
def init_params(key, d_model, n_heads, d_keys=None, d_values=None):
    d_keys = d_keys or d_model // n_heads
    d_values = d_values or d_model // n_heads
    dims = {
        "q": (d_model, d_keys * n_heads),
        "k": (d_model, d_keys * n_heads),
        "v": (d_model, d_values * n_heads),
        "o": (d_values * n_heads, d_model),
    }
    params = {}
    for name, (din, dout) in dims.items():
        key, kw, kb = jax.random.split(key, 3)
        bound = 1.0 / math.sqrt(din)
        params["W" + name] = jax.random.uniform(kw, (din, dout), jnp.float32, -bound, bound)
        params["b" + name] = jax.random.uniform(kb, (dout,), jnp.float32, -bound, bound)
    return params


if __name__ == "__main__":
    B, L, d_model, n_heads = 2, 8, 32, 4

    key = jax.random.PRNGKey(0)
    kx, kk2, kv2, kp = jax.random.split(key, 4)
    x = jax.random.normal(kx, (B, L, d_model), jnp.float32)
    params = init_params(kp, d_model, n_heads)

    # Self-attention (q = k = v): concatenated-weight single-matmul QKV path.
    fwd_self = jax.jit(functools.partial(
        attention_layer_forward, n_heads=n_heads, self_attention=True))
    out, attn = fwd_self(params, x, x, x)
    out = jax.block_until_ready(out)
    assert out.shape == (B, L, d_model)
    assert attn is None

    # Cross-attention (distinct keys/values, S != L): separate projections.
    S = 12
    keys_in = jax.random.normal(kk2, (B, S, d_model), jnp.float32)
    vals_in = jax.random.normal(kv2, (B, S, d_model), jnp.float32)
    fwd_cross = jax.jit(functools.partial(
        attention_layer_forward, n_heads=n_heads, self_attention=False))
    out2, _ = fwd_cross(params, x, keys_in, vals_in)
    out2 = jax.block_until_ready(out2)
    assert out2.shape == (B, L, d_model)

    print("KERNEL_OK")
</pallas_src>

<mosaic_0001>
module attributes {stable_mosaic.version = 11 : i64} {
  func.func @_linear_kernel(%arg0: i32, %arg1: memref<16x32xbf16, #tpu.memory_space<vmem>>, %arg2: memref<32x96xbf16, #tpu.memory_space<vmem>>, %arg3: memref<1x96xf32, #tpu.memory_space<vmem>>, %arg4: memref<16x96xf32, #tpu.memory_space<vmem>>) attributes {dimension_semantics = [#tpu.dimension_semantics<parallel>], iteration_bounds = array<i64: 1>, scalar_prefetch = 0 : i64, scratch_operands = 0 : i64, tpu.core_type = #tpu.core_type<tc>, window_params = [{transform_indices = @transform_0, window_bounds = array<i64: 16, 32>}, {pipeline_mode = #tpu.pipeline_mode<synchronous>, transform_indices = @transform_1, window_bounds = array<i64: 32, 96>}, {pipeline_mode = #tpu.pipeline_mode<synchronous>, transform_indices = @transform_2, window_bounds = array<i64: 1, 96>}, {transform_indices = @transform_3, window_bounds = array<i64: 16, 96>}]} {
    %c0 = arith.constant 0 : index
    %c0_0 = arith.constant 0 : index
    %0 = vector.load %arg1[%c0, %c0_0] : memref<16x32xbf16, #tpu.memory_space<vmem>>, vector<16x32xbf16>
    %c0_1 = arith.constant 0 : index
    %c0_2 = arith.constant 0 : index
    %1 = vector.load %arg2[%c0_1, %c0_2] : memref<32x96xbf16, #tpu.memory_space<vmem>>, vector<32x96xbf16>
    %cst = arith.constant dense<0.000000e+00> : vector<16x96xf32>
    %2 = tpu.matmul %0, %1, %cst {dimension_numbers = #tpu.dot_dimension_numbers<[1], [0], [0], [1], [0, 0, 1, 1], [], []>} : vector<16x32xbf16>, vector<32x96xbf16>, vector<16x96xf32> -> vector<16x96xf32>
    %c0_3 = arith.constant 0 : index
    %c0_4 = arith.constant 0 : index
    %3 = vector.load %arg3[%c0_3, %c0_4] : memref<1x96xf32, #tpu.memory_space<vmem>>, vector<1x96xf32>
    %4 = vector.broadcast %3 : vector<1x96xf32> to vector<16x96xf32>
    %5 = arith.addf %2, %4 : vector<16x96xf32>
    %c0_5 = arith.constant 0 : index
    %c0_6 = arith.constant 0 : index
    %6 = vector.load %arg4[%c0_5, %c0_6] : memref<16x96xf32, #tpu.memory_space<vmem>>, vector<16x96xf32>
    tpu.vector_store %arg4[%c0_5, %c0_6], %5 {strides = array<i32>} : memref<16x96xf32, #tpu.memory_space<vmem>>, vector<16x96xf32>,
    return
  }
  func.func @transform_0(%arg0: i32) -> (i32, i32) {
    %c0_i32 = arith.constant 0 : i32
    %c0_i32_0 = arith.constant 0 : i32
    return %arg0, %c0_i32 : i32, i32
  }
  func.func @transform_1(%arg0: i32) -> (i32, i32) {
    %c0_i32 = arith.constant 0 : i32
    %c0_i32_0 = arith.constant 0 : i32
    %c0_i32_1 = arith.constant 0 : i32
    return %c0_i32, %c0_i32_0 : i32, i32
  }
  func.func @transform_2(%arg0: i32) -> (i32, i32) {
    %c0_i32 = arith.constant 0 : i32
    %c0_i32_0 = arith.constant 0 : i32
    %c0_i32_1 = arith.constant 0 : i32
    return %c0_i32, %c0_i32_0 : i32, i32
  }
  func.func @transform_3(%arg0: i32) -> (i32, i32) {
    %c0_i32 = arith.constant 0 : i32
    %c0_i32_0 = arith.constant 0 : i32
    return %arg0, %c0_i32 : i32, i32
  }
}

module attributes {stable_mosaic.version = 11 : i64} {
  func.func @_linear_kernel(%arg0: i32, %arg1: memref<16x32xbf16, #tpu.memory_space<vmem>>, %arg2: memref<32x32xbf16, #tpu.memory_space<vmem>>, %arg3: memref<1x32xf32, #tpu.memory_space<vmem>>, %arg4: memref<16x32xf32, #tpu.memory_space<vmem>>) attributes {dimension_semantics = [#tpu.dimension_semantics<parallel>], iteration_bounds = array<i64: 1>, scalar_prefetch = 0 : i64, scratch_operands = 0 : i64, tpu.core_type = #tpu.core_type<tc>, window_params = [{transform_indices = @transform_0, window_bounds = array<i64: 16, 32>}, {pipeline_mode = #tpu.pipeline_mode<synchronous>, transform_indices = @transform_1, window_bounds = array<i64: 32, 32>}, {pipeline_mode = #tpu.pipeline_mode<synchronous>, transform_indices = @transform_2, window_bounds = array<i64: 1, 32>}, {transform_indices = @transform_3, window_bounds = array<i64: 16, 32>}]} {
    %c0 = arith.constant 0 : index
    %c0_0 = arith.constant 0 : index
    %0 = vector.load %arg1[%c0, %c0_0] : memref<16x32xbf16, #tpu.memory_space<vmem>>, vector<16x32xbf16>
    %c0_1 = arith.constant 0 : index
    %c0_2 = arith.constant 0 : index
    %1 = vector.load %arg2[%c0_1, %c0_2] : memref<32x32xbf16, #tpu.memory_space<vmem>>, vector<32x32xbf16>
    %cst = arith.constant dense<0.000000e+00> : vector<16x32xf32>
    %2 = tpu.matmul %0, %1, %cst {dimension_numbers = #tpu.dot_dimension_numbers<[1], [0], [0], [1], [0, 0, 1, 1], [], []>} : vector<16x32xbf16>, vector<32x32xbf16>, vector<16x32xf32> -> vector<16x32xf32>
    %c0_3 = arith.constant 0 : index
    %c0_4 = arith.constant 0 : index
    %3 = vector.load %arg3[%c0_3, %c0_4] : memref<1x32xf32, #tpu.memory_space<vmem>>, vector<1x32xf32>
    %4 = vector.broadcast %3 : vector<1x32xf32> to vector<16x32xf32>
    %5 = arith.addf %2, %4 : vector<16x32xf32>
    %c0_5 = arith.constant 0 : index
    %c0_6 = arith.constant 0 : index
    %6 = vector.load %arg4[%c0_5, %c0_6] : memref<16x32xf32, #tpu.memory_space<vmem>>, vector<16x32xf32>
    tpu.vector_store %arg4[%c0_5, %c0_6], %5 {strides = array<i32>} : memref<16x32xf32, #tpu.memory_space<vmem>>, vector<16x32xf32>,
    return
  }
  func.func @transform_0(%arg0: i32) -> (i32, i32) {
    %c0_i32 = arith.constant 0 : i32
    %c0_i32_0 = arith.constant 0 : i32
    return %arg0, %c0_i32 : i32, i32
  }
  func.func @transform_1(%arg0: i32) -> (i32, i32) {
    %c0_i32 = arith.constant 0 : i32
    %c0_i32_0 = arith.constant 0 : i32
    %c0_i32_1 = arith.constant 0 : i32
    return %c0_i32, %c0_i32_0 : i32, i32
  }
  func.func @transform_2(%arg0: i32) -> (i32, i32) {
    %c0_i32 = arith.constant 0 : i32
    %c0_i32_0 = arith.constant 0 : i32
    %c0_i32_1 = arith.constant 0 : i32
    return %c0_i32, %c0_i32_0 : i32, i32
  }
  func.func @transform_3(%arg0: i32) -> (i32, i32) {
    %c0_i32 = arith.constant 0 : i32
    %c0_i32_0 = arith.constant 0 : i32
    return %arg0, %c0_i32 : i32, i32
  }
}

module attributes {stable_mosaic.version = 11 : i64} {
  func.func @_time_delay_agg_kernel(%arg0: i32, %arg1: i32, %arg2: memref<4xi32, #tpu.memory_space<smem>>, %arg3: memref<4xf32, #tpu.memory_space<smem>>, %arg4: memref<1x8x32xbf16, #tpu.memory_space<vmem>>, %arg5: memref<1x8x32xbf16, #tpu.memory_space<vmem>>, %arg6: memref<16x32xf32, #tpu.memory_space<vmem>>) attributes {dimension_semantics = [#tpu.dimension_semantics<parallel>, #tpu.dimension_semantics<parallel>], iteration_bounds = array<i64: 2, 1>, scalar_prefetch = 2 : i64, scratch_operands = 1 : i64, tpu.core_type = #tpu.core_type<tc>, window_params = [{transform_indices = @transform_0, window_bounds = array<i64: 1, 8, 32>}, {transform_indices = @transform_1, window_bounds = array<i64: 1, 8, 32>}]} {
    %c0 = arith.constant 0 : index
    %c0_0 = arith.constant 0 : index
    %c0_1 = arith.constant 0 : index
    %0 = vector.load %arg4[%c0, %c0_0, %c0_1] : memref<1x8x32xbf16, #tpu.memory_space<vmem>>, vector<1x8x32xbf16>
    %1 = vector.shape_cast %0 : vector<1x8x32xbf16> to vector<8x32xbf16>
    %2 = arith.extf %1 : vector<8x32xbf16> to vector<8x32xf32>
    %c0_2 = arith.constant 0 : index
    %c0_3 = arith.constant 0 : index
    %3 = vector.load %arg6[%c0_2, %c0_3] : memref<16x32xf32, #tpu.memory_space<vmem>>, vector<8x32xf32>
    tpu.vector_store %arg6[%c0_2, %c0_3], %2 {strides = array<i32>} : memref<16x32xf32, #tpu.memory_space<vmem>>, vector<8x32xf32>,
    %c8 = arith.constant 8 : index
    %c0_4 = arith.constant 0 : index
    %4 = vector.load %arg6[%c8, %c0_4] : memref<16x32xf32, #tpu.memory_space<vmem>>, vector<8x32xf32>
    tpu.vector_store %arg6[%c8, %c0_4], %2 {strides = array<i32>} : memref<16x32xf32, #tpu.memory_space<vmem>>, vector<8x32xf32>,
    %c2_i32 = arith.constant 2 : i32
    %5 = arith.muli %arg0, %c2_i32 : i32
    %c0_i32 = arith.constant 0 : i32
    %6 = arith.addi %5, %c0_i32 : i32
    %7 = arith.index_cast %6 : i32 to index
    %8 = memref.load %arg2[%7] : memref<4xi32, #tpu.memory_space<smem>>
    %c2_i32_5 = arith.constant 2 : i32
    %9 = arith.muli %arg0, %c2_i32_5 : i32
    %c0_i32_6 = arith.constant 0 : i32
    %10 = arith.addi %9, %c0_i32_6 : i32
    %11 = arith.index_cast %10 : i32 to index
    %12 = memref.load %arg3[%11] : memref<4xf32, #tpu.memory_space<smem>>
    %13 = arith.index_cast %8 : i32 to index
    %c0_7 = arith.constant 0 : index
    %14 = vector.load %arg6[%13, %c0_7] : memref<16x32xf32, #tpu.memory_space<vmem>>, vector<8x32xf32>
    %15 = vector.broadcast %12 : f32 to vector<8x32xf32>
    %16 = arith.mulf %15, %14 : vector<8x32xf32>
    %c2_i32_8 = arith.constant 2 : i32
    %17 = arith.muli %arg0, %c2_i32_8 : i32
    %c1_i32 = arith.constant 1 : i32
    %18 = arith.addi %17, %c1_i32 : i32
    %19 = arith.index_cast %18 : i32 to index
    %20 = memref.load %arg2[%19] : memref<4xi32, #tpu.memory_space<smem>>
    %c2_i32_9 = arith.constant 2 : i32
    %21 = arith.muli %arg0, %c2_i32_9 : i32
    %c1_i32_10 = arith.constant 1 : i32
    %22 = arith.addi %21, %c1_i32_10 : i32
    %23 = arith.index_cast %22 : i32 to index
    %24 = memref.load %arg3[%23] : memref<4xf32, #tpu.memory_space<smem>>
    %25 = arith.index_cast %20 : i32 to index
    %c0_11 = arith.constant 0 : index
    %26 = vector.load %arg6[%25, %c0_11] : memref<16x32xf32, #tpu.memory_space<vmem>>, vector<8x32xf32>
    %27 = vector.broadcast %24 : f32 to vector<8x32xf32>
    %28 = arith.mulf %27, %26 : vector<8x32xf32>
    %29 = arith.addf %16, %28 : vector<8x32xf32>
    %30 = arith.truncf %29 : vector<8x32xf32> to vector<8x32xbf16>
    %c0_12 = arith.constant 0 : index
    %c0_13 = arith.constant 0 : index
    %c0_14 = arith.constant 0 : index
    %31 = vector.load %arg5[%c0_12, %c0_13, %c0_14] : memref<1x8x32xbf16, #tpu.memory_space<vmem>>, vector<1x8x32xbf16>
    %32 = vector.shape_cast %31 : vector<1x8x32xbf16> to vector<8x32xbf16>
    %33 = vector.shape_cast %30 : vector<8x32xbf16> to vector<1x8x32xbf16>
    tpu.vector_store %arg5[%c0_12, %c0_13, %c0_14], %33 {strides = array<i32>} : memref<1x8x32xbf16, #tpu.memory_space<vmem>>, vector<1x8x32xbf16>,
    return
  }
  func.func @transform_0(%arg0: i32, %arg1: i32, %arg2: memref<4xi32, #tpu.memory_space<smem>>, %arg3: memref<4xf32, #tpu.memory_space<smem>>) -> (i32, i32, i32) {
    %c0_i32 = arith.constant 0 : i32
    %c0_i32_0 = arith.constant 0 : i32
    return %arg0, %c0_i32, %arg1 : i32, i32, i32
  }
  func.func @transform_1(%arg0: i32, %arg1: i32, %arg2: memref<4xi32, #tpu.memory_space<smem>>, %arg3: memref<4xf32, #tpu.memory_space<smem>>) -> (i32, i32, i32) {
    %c0_i32 = arith.constant 0 : i32
    %c0_i32_0 = arith.constant 0 : i32
    return %arg0, %c0_i32, %arg1 : i32, i32, i32
  }
}

</mosaic_0001>

<llo_original>
// kernel: reverse.0
$region0: #{reverse.0}
  %s0 = inlined_call_operand.vmem [shape: f32[2,3], index: 0, kind: input, shape index: {}]
  %s1 = inlined_call_operand.vmem [shape: f32[2,3], index: 1, kind: output, shape index: {}]
  %v2 = vlaneseq
  %v3 = vsub.s32 2, %v2
  %4 = vset.pattern.permute.xlu0 %v3
  $region1: #{reverse.0} parent=0
    #allocation0 [shape = 'u8[4096]{0}', space=vmem, size = 0x1000, scoped, tag = 'operand span for operand 0']
    #allocation1 [shape = 'u8[1024]{0}', space=vmem, size = 0x400, scoped, tag = 'packed  for operand 0']
    #allocation2 [shape = 'u8[4096]{0}', space=vmem, size = 0x1000, scoped, tag = 'operand span for operand 1']
    #allocation3 [shape = 'u8[1024]{0}', space=vmem, size = 0x400, scoped, tag = 'packed  for operand 1']
    // Predicated region
    $region2: #{reverse.0} parent=1 // pred_check
      _
    $region3: #{reverse.0} parent=1 // pred_check_branch
      %6 = sbr.rel (0) target = $region5
    $region4: #{reverse.0} parent=1 // pred_region
      // Predicated region
      $region6: #{reverse.0} parent=4 // pred_check
        _
      $region7: #{reverse.0} parent=4 // pred_check_branch
        %8 = sbr.rel target = $region9
      $region8: #{reverse.0} parent=4 // pred_region
        // Predicated region
        $region21: #{reverse.0} parent=8 // pred_check
          _
        $region22: #{reverse.0} parent=8 // pred_check_branch
          %23 = sbr.rel (0) target = $region24
        $region23: #{reverse.0} parent=8 // pred_region
          loop: start=0, step=1, limit=1
          $region25: #{reverse.0} parent=23 // loop_pre_header
            _
          $region26: #{reverse.0} parent=23 // loop_header
            %s26 = sphi 0, %s30
            %p27 = scmp.ge.s32.totalorder %s26, 1
            %s31 = sphi %s0, %s0
            %s32 = sphi [#allocation1], [#allocation1]
          $region27: #{reverse.0} parent=23 // loop_header_branch
            %29 = sbr.rel (%p27) target = $region31
          $region28: #{reverse.0} parent=23 // loop_body
            %v33 = vld [vmem:[%s31] sm:$0x3]
            %34 = vst [vmem:[%s32] sm:$0x3] %v33
          $region29: #{reverse.0} parent=23 // loop_footer
            %s30 = sadd.s32 1, %s26
          $region30: #{reverse.0} parent=23 // loop_footer_branch
            %25 = sbr.rel target = $region26
          $region31: #{reverse.0} parent=23 // loop_exit
            _
        $region24: #{reverse.0} parent=8 // pred_fallthru
          _
      $region9: #{reverse.0} parent=4 // pred_fallthru
        _
      // Predicated region
      $region10: #{reverse.0} parent=4 // pred_check
        _
      $region11: #{reverse.0} parent=4 // pred_check_branch
        %10 = sbr.rel (0) target = $region13
      $region12: #{reverse.0} parent=4 // pred_region
        loop: start=0, step=1, limit=1
        $region14: #{reverse.0} parent=12 // loop_pre_header
          _
        $region15: #{reverse.0} parent=12 // loop_header
          %s13 = sphi 0, %s17
          %p14 = scmp.ge.s32.totalorder %s13, 1
          %s18 = sphi %s0, %s0
          %s19 = sphi [#allocation1], [#allocation1]
        $region16: #{reverse.0} parent=12 // loop_header_branch
          %16 = sbr.rel (%p14) target = $region20
        $region17: #{reverse.0} parent=12 // loop_body
          %v20 = vld [vmem:[%s18] sm:$0x3]
          %21 = vst [vmem:[%s19] sm:$0x3] %v20
        $region18: #{reverse.0} parent=12 // loop_footer
          %s17 = sadd.s32 1, %s13
        $region19: #{reverse.0} parent=12 // loop_footer_branch
          %12 = sbr.rel target = $region15
        $region20: #{reverse.0} parent=12 // loop_exit
          _
      $region13: #{reverse.0} parent=4 // pred_fallthru
        _
    $region5: #{reverse.0} parent=1 // pred_fallthru
      _
    %35 = vnop
    %s37 = sshllo.u32 0, 2
    %v38 = vld [vmem:[#allocation1] sm:%s37]
    %39 = vst [vmem:[#allocation0] sm:%s37] %v38
    %v40 = vld [vmem:[#allocation0] sm:$0xff]
    %41 = vperm.xlu0 %4, %v40
    %v42 = vpop.permute.xlu0 %41
    %43 = vst [vmem:[#allocation2] sm:$0xff] %v42
    %s45 = sshllo.u32 0, 2
    %v47 = vld [vmem:[#allocation2] sm:%s45]
    %s48 = sshllo.u32 0, 2
    %49 = vst [vmem:[#allocation3] sm:%s48] %v47
    // Predicated region
    $region32: #{reverse.0} parent=1 // pred_check
      _
    $region33: #{reverse.0} parent=1 // pred_check_branch
      %51 = sbr.rel (0) target = $region35
    $region34: #{reverse.0} parent=1 // pred_region
      // Predicated region
      $region36: #{reverse.0} parent=34 // pred_check
        _
      $region37: #{reverse.0} parent=34 // pred_check_branch
        %53 = sbr.rel target = $region39
      $region38: #{reverse.0} parent=34 // pred_region
        // Predicated region
        $region51: #{reverse.0} parent=38 // pred_check
          _
        $region52: #{reverse.0} parent=38 // pred_check_branch
          %68 = sbr.rel (0) target = $region54
        $region53: #{reverse.0} parent=38 // pred_region
          loop: start=0, step=1, limit=1
          $region55: #{reverse.0} parent=53 // loop_pre_header
            _
          $region56: #{reverse.0} parent=53 // loop_header
            %s71 = sphi 0, %s75
            %p72 = scmp.ge.s32.totalorder %s71, 1
            %s76 = sphi [#allocation3], [#allocation3]
            %s77 = sphi %s1, %s1
          $region57: #{reverse.0} parent=53 // loop_header_branch
            %74 = sbr.rel (%p72) target = $region61
          $region58: #{reverse.0} parent=53 // loop_body
            %v78 = vld [vmem:[%s76] sm:$0x3]
            %79 = vst [vmem:[%s77] sm:$0x3] %v78
          $region59: #{reverse.0} parent=53 // loop_footer
            %s75 = sadd.s32 1, %s71
          $region60: #{reverse.0} parent=53 // loop_footer_branch
            %70 = sbr.rel target = $region56
          $region61: #{reverse.0} parent=53 // loop_exit
            _
        $region54: #{reverse.0} parent=38 // pred_fallthru
          _
      $region39: #{reverse.0} parent=34 // pred_fallthru
        _
      // Predicated region
      $region40: #{reverse.0} parent=34 // pred_check
        _
      $region41: #{reverse.0} parent=34 // pred_check_branch
        %55 = sbr.rel (0) target = $region43
      $region42: #{reverse.0} parent=34 // pred_region
        loop: start=0, step=1, limit=1
        $region44: #{reverse.0} parent=42 // loop_pre_header
          _
        $region45: #{reverse.0} parent=42 // loop_header
          %s58 = sphi 0, %s62
          %p59 = scmp.ge.s32.totalorder %s58, 1
          %s63 = sphi [#allocation3], [#allocation3]
          %s64 = sphi %s1, %s1
        $region46: #{reverse.0} parent=42 // loop_header_branch
          %61 = sbr.rel (%p59) target = $region50
        $region47: #{reverse.0} parent=42 // loop_body
          %v65 = vld [vmem:[%s63] sm:$0x3]
          %66 = vst [vmem:[%s64] sm:$0x3] %v65
        $region48: #{reverse.0} parent=42 // loop_footer
          %s62 = sadd.s32 1, %s58
        $region49: #{reverse.0} parent=42 // loop_footer_branch
          %57 = sbr.rel target = $region45
        $region50: #{reverse.0} parent=42 // loop_exit
          _
      $region43: #{reverse.0} parent=34 // pred_fallthru
        _
    $region35: #{reverse.0} parent=1 // pred_fallthru
      _
    %80 = vnop

// kernel: attention_layer_forward.3
$region0: #{attention_layer_forward.3}
  #allocation0 [shape = 'u32[]', space=smem, size = 0x4, offset = 0x4, fixed_abs, tag = 'smem constant byte address 0x4 - core index']
  #allocation1 [shape = 'u32[144,128]{1,0:T(1,128)}', space=vmem, size = 0x12000, scoped, tag = 'internal scratch']
  %s0 = inlined_call_operand.vmem [shape: bf16[16,32], index: 0, kind: input, shape index: {}]
  %s1 = inlined_call_operand.vmem [shape: bf16[32,96], index: 1, kind: input, shape index: {}]
  %s2 = inlined_call_operand.vmem [shape: f32[1,96], index: 2, kind: input, shape index: {}]
  %s3 = inlined_call_operand.vmem [shape: f32[16,96], index: 3, kind: output, shape index: {}]
  %s4 = sld [smem:[#allocation0]]
  $region22: #{attention_layer_forward.3} parent=0
    _
  %s6 = ssub.s32 1, %s4
  %s7 = scalar_select 0, %s6, %s4
  // Predicated region
  $region2: #{attention_layer_forward.3} parent=0 // pred_check
    _
  $region3: #{attention_layer_forward.3} parent=0 // pred_check_branch
    %9 = sbr.rel (0) target = $region5
  $region4: #{attention_layer_forward.3} parent=0 // pred_region
    _
  $region5: #{attention_layer_forward.3} parent=0 // pred_fallthru
    _
  // Predicated region
  $region6: #{attention_layer_forward.3} parent=0 // pred_check
    _
  $region7: #{attention_layer_forward.3} parent=0 // pred_check_branch
    %11 = sbr.rel (0) target = $region9
  $region8: #{attention_layer_forward.3} parent=0 // pred_region
    _
  $region9: #{attention_layer_forward.3} parent=0 // pred_fallthru
    _
  // Predicated region
  $region10: #{attention_layer_forward.3} parent=0 // pred_check
    _
  $region11: #{attention_layer_forward.3} parent=0 // pred_check_branch
    %13 = sbr.rel (0) target = $region13
  $region12: #{attention_layer_forward.3} parent=0 // pred_region
    _
  $region13: #{attention_layer_forward.3} parent=0 // pred_fallthru
    _
  %v15 = vld [vmem:[%s0] sm:$0xf]
  %v16 = vld [vmem:[%s0 + $0x4] sm:$0xf]
  %v17 = vld [vmem:[%s1] sm:$0xf]
  %v18 = vld [vmem:[%s1 + $0x4] sm:$0xf]
  %v19 = vld [vmem:[%s1 + $0x8] sm:$0xf]
  %v20 = vld [vmem:[%s1 + $0xc] sm:$0xf]
  %v21 = vld [vmem:[%s2] sm:$0x1]
  %v23 = vlaneseq
  %v24 = vshrl.u32 %v23, 7
  %v25 = vsub.s32 0, %v24
  %v26 = vrot.slane %v21, %v25
  %v30 = vunpack.c.l.b16 %v15
  %v31 = vunpack.c.l.b16 %v16
  %v32 = vpack.c.b16 %v31, %v30
  %v37 = vunpack.c.l.b16 %v17
  %v38 = vunpack.c.l.b16 %v18
  %v39 = vunpack.c.l.b16 %v19
  %v40 = vunpack.c.l.b16 %v20
  %v41 = vpack.c.b16 %v38, %v37
  %v42 = vpack.c.b16 %v40, %v39
  %vm45 = vcmask 261120
  %v47 = vsel %vm45, %v32, 0
  %49 = vmatprep.subr.bf16.mxu0 0
  %50 = vmatpush1.bf16.msra.mxu0 %v41
  %51 = vmatprep.subr.bf16.mxu0 0
  %52 = vmatpush1.bf16.msra.mxu0 %v42
  %53 = vmatprep.subr.bf16.mxu0 0
  %54 = vmatpush1.bf16.msra.mxu0 0
  %55 = vmatprep.subr.bf16.mxu0 0
  %56 = vmatpush1.bf16.msra.mxu0 0
  %57 = vmatprep.subr.bf16.mxu0 0
  %58 = vmatpush1.bf16.msra.mxu0 0
  %59 = vmatprep.subr.bf16.mxu0 0
  %60 = vmatpush1.bf16.msra.mxu0 0
  %61 = vmatprep.subr.bf16.mxu0 0
  %62 = vmatpush1.bf16.msra.mxu0 0
  %63 = vmatprep.subr.bf16.mxu0 0
  %64 = vmatpush1.bf16.msra.mxu0 0
  %65 = vmatprep.subr.bf16.mxu0 0
  %66 = vmatpush1.bf16.msra.mxu0 0
  %67 = vmatprep.subr.bf16.mxu0 0
  %68 = vmatpush1.bf16.msra.mxu0 0
  %69 = vmatprep.subr.bf16.mxu0 0
  %70 = vmatpush1.bf16.msra.mxu0 0
  %71 = vmatprep.subr.bf16.mxu0 0
  %72 = vmatpush1.bf16.msra.mxu0 0
  %73 = vmatprep.subr.bf16.mxu0 0
  %74 = vmatpush1.bf16.msra.mxu0 0
  %75 = vmatprep.subr.bf16.mxu0 0
  %76 = vmatpush1.bf16.msra.mxu0 0
  %77 = vmatprep.subr.bf16.mxu0 0
  %78 = vmatpush1.bf16.msra.mxu0 0
  %79 = vmatprep.subr.bf16.mxu0 0
  %80 = vmatpush1.bf16.msra.mxu0 0
  %81 = vmatprep.mubr.bf16.mxu0 0
  %82 = vmatmul.mubr.bf16.gmra.mrb[0].mxu0 %v47
  %v83 = vpop.f32.mrb[0].mxu0
  %v84 = vadd.f32 %v26, %v83
  %v85 = vpop.f32.mrb[0].mxu0
  %v86 = vpop.f32.mrb[0].mxu0
  %v87 = vadd.f32 %v26, %v86
  %v88 = vpop.f32.mrb[0].mxu0
  %89 = vdwg.mxu0
  %vm90 = vcmask 785408
  %91 = vst.msk [vmem:[%s3] sm:$0xff] %vm90, %v84
  %92 = vst.msk [vmem:[%s3 + $0x8] sm:$0xff] %vm90, %v87
  // Predicated region
  $region14: #{attention_layer_forward.3} parent=0 // pred_check
    _
  $region15: #{attention_layer_forward.3} parent=0 // pred_check_branch
    %94 = sbr.rel (0) target = $region17
  $region16: #{attention_layer_forward.3} parent=0 // pred_region
    _
  $region17: #{attention_layer_forward.3} parent=0 // pred_fallthru
    _
  // Predicated region
  $region18: #{attention_layer_forward.3} parent=0 // pred_check
    _
  $region19: #{attention_layer_forward.3} parent=0 // pred_check_branch
    %96 = sbr.rel (0) target = $region21
  $region20: #{attention_layer_forward.3} parent=0 // pred_region
    _
  $region21: #{attention_layer_forward.3} parent=0 // pred_fallthru
    _

// kernel: attention_layer_forward.5
$region0: #{attention_layer_forward.5}
  #allocation0 [shape = 'u32[]', space=smem, size = 0x4, offset = 0x4, fixed_abs, tag = 'smem constant byte address 0x4 - core index']
  #allocation1 [shape = 'u32[144,128]{1,0:T(1,128)}', space=vmem, size = 0x12000, scoped, tag = 'internal scratch']
  %s0 = inlined_call_operand.vmem [shape: bf16[16,32], index: 0, kind: input, shape index: {}]
  %s1 = inlined_call_operand.vmem [shape: bf16[32,32], index: 1, kind: input, shape index: {}]
  %s2 = inlined_call_operand.vmem [shape: f32[1,32], index: 2, kind: input, shape index: {}]
  %s3 = inlined_call_operand.hbm [shape: f32[16,32], index: 3, kind: output, shape index: {}]
  %s4 = sld [smem:[#allocation0]]
  $region22: #{attention_layer_forward.5} parent=0
    _
  %s6 = ssub.s32 1, %s4
  %s7 = scalar_select 0, %s6, %s4
  $region1: #{attention_layer_forward.5} parent=0
    #allocation2 [shape = 'u8[8192]{0}', space=vmem, size = 0x2000, scoped, tag = 'output window, operand 0, single buffered']
    #allocation3 [shape = 's32[1]{0}', space=sflag, size = 0x4, scoped, tag = 'scoped memory for attention_layer_forward.5']
    %8 = vsyncpa [#allocation3], 0
    // Predicated region
    $region2: #{attention_layer_forward.5} parent=1 // pred_check
      _
    $region3: #{attention_layer_forward.5} parent=1 // pred_check_branch
      %10 = sbr.rel (0) target = $region5
    $region4: #{attention_layer_forward.5} parent=1 // pred_region
      _
    $region5: #{attention_layer_forward.5} parent=1 // pred_fallthru
      _
    // Predicated region
    $region6: #{attention_layer_forward.5} parent=1 // pred_check
      _
    $region7: #{attention_layer_forward.5} parent=1 // pred_check_branch
      %12 = sbr.rel (0) target = $region9
    $region8: #{attention_layer_forward.5} parent=1 // pred_region
      _
    $region9: #{attention_layer_forward.5} parent=1 // pred_fallthru
      _
    // Predicated region
    $region10: #{attention_layer_forward.5} parent=1 // pred_check
      _
    $region11: #{attention_layer_forward.5} parent=1 // pred_check_branch
      %14 = sbr.rel (0) target = $region13
    $region12: #{attention_layer_forward.5} parent=1 // pred_region
      _
    $region13: #{attention_layer_forward.5} parent=1 // pred_fallthru
      _
    %v16 = vld [vmem:[%s0] sm:$0xf]
    %v17 = vld [vmem:[%s0 + $0x4] sm:$0xf]
    %v18 = vld [vmem:[%s1] sm:$0xf]
    %v19 = vld [vmem:[%s1 + $0x4] sm:$0xf]
    %v20 = vld [vmem:[%s1 + $0x8] sm:$0xf]
    %v21 = vld [vmem:[%s1 + $0xc] sm:$0xf]
    %v22 = vld [vmem:[%s2] sm:$0x1]
    %v24 = vlaneseq
    %v25 = vshrl.u32 %v24, 7
    %v26 = vsub.s32 0, %v25
    %v27 = vrot.slane %v22, %v26
    %v31 = vunpack.c.l.b16 %v16
    %v32 = vunpack.c.l.b16 %v17
    %v33 = vpack.c.b16 %v32, %v31
    %v38 = vunpack.c.l.b16 %v18
    %v39 = vunpack.c.l.b16 %v19
    %v40 = vunpack.c.l.b16 %v20
    %v41 = vunpack.c.l.b16 %v21
    %v42 = vpack.c.b16 %v39, %v38
    %v43 = vpack.c.b16 %v41, %v40
    %vm46 = vcmask 261120
    %v48 = vsel %vm46, %v33, 0
    %50 = vmatprep.subr.bf16.mxu0 0
    %51 = vmatpush1.bf16.msra.mxu0 %v42
    %52 = vmatprep.subr.bf16.mxu0 0
    %53 = vmatpush1.bf16.msra.mxu0 %v43
    %54 = vmatprep.subr.bf16.mxu0 0
    %55 = vmatpush1.bf16.msra.mxu0 0
    %56 = vmatprep.subr.bf16.mxu0 0
    %57 = vmatpush1.bf16.msra.mxu0 0
    %58 = vmatprep.subr.bf16.mxu0 0
    %59 = vmatpush1.bf16.msra.mxu0 0
    %60 = vmatprep.subr.bf16.mxu0 0
    %61 = vmatpush1.bf16.msra.mxu0 0
    %62 = vmatprep.subr.bf16.mxu0 0
    %63 = vmatpush1.bf16.msra.mxu0 0
    %64 = vmatprep.subr.bf16.mxu0 0
    %65 = vmatpush1.bf16.msra.mxu0 0
    %66 = vmatprep.subr.bf16.mxu0 0
    %67 = vmatpush1.bf16.msra.mxu0 0
    %68 = vmatprep.subr.bf16.mxu0 0
    %69 = vmatpush1.bf16.msra.mxu0 0
    %70 = vmatprep.subr.bf16.mxu0 0
    %71 = vmatpush1.bf16.msra.mxu0 0
    %72 = vmatprep.subr.bf16.mxu0 0
    %73 = vmatpush1.bf16.msra.mxu0 0
    %74 = vmatprep.subr.bf16.mxu0 0
    %75 = vmatpush1.bf16.msra.mxu0 0
    %76 = vmatprep.subr.bf16.mxu0 0
    %77 = vmatpush1.bf16.msra.mxu0 0
    %78 = vmatprep.subr.bf16.mxu0 0
    %79 = vmatpush1.bf16.msra.mxu0 0
    %80 = vmatprep.subr.bf16.mxu0 0
    %81 = vmatpush1.bf16.msra.mxu0 0
    %82 = vmatprep.mubr.bf16.mxu0 0
    %83 = vmatmul.mubr.bf16.gmra.mrb[0].mxu0 %v48
    %v84 = vpop.f32.mrb[0].mxu0
    %v85 = vadd.f32 %v27, %v84
    %v86 = vpop.f32.mrb[0].mxu0
    %v87 = vpop.f32.mrb[0].mxu0
    %v88 = vadd.f32 %v27, %v87
    %v89 = vpop.f32.mrb[0].mxu0
    %90 = vdwg.mxu0
    %91 = vst.msk [vmem:[#allocation2] sm:$0xff] %vm46, %v85
    %92 = vst.msk [vmem:[#allocation2 + $0x8] sm:$0xff] %vm46, %v88
    // Predicated region
    $region14: #{attention_layer_forward.5} parent=1 // pred_check
      _
    $region15: #{attention_layer_forward.5} parent=1 // pred_check_branch
      %94 = sbr.rel (0) target = $region17
    $region16: #{attention_layer_forward.5} parent=1 // pred_region
      %s96 = ssub.s32 256, 256
      %97 = vsyncadd [#allocation3], %s96
      %s98 = sshll.u32 [#allocation2], 4
      %s99 = int_to_ptr.vmem [resolvable:$true] %s98
      %104 = dma.vmem_to_hbm [thread:$0]  %s99, 256, %s3, [#allocation3], 128, 128, 8
    $region17: #{attention_layer_forward.5} parent=1 // pred_fallthru
      _
    // Predicated region
    $region18: #{attention_layer_forward.5} parent=1 // pred_check
      _
    $region19: #{attention_layer_forward.5} parent=1 // pred_check_branch
      %106 = sbr.rel (0) target = $region21
    $region20: #{attention_layer_forward.5} parent=1 // pred_region
      %107 = dma.done [#allocation3], 256
    $region21: #{attention_layer_forward.5} parent=1 // pred_fallthru
      _
    %108 = vsyncpa [#allocation3], 1

// kernel: attention_layer_forward.4
$region0: #{attention_layer_forward.4}
  #allocation0 [shape = 'u32[]', space=smem, size = 0x4, offset = 0x4, fixed_abs, tag = 'smem constant byte address 0x4 - core index']
  #allocation1 [shape = 'u32[144,128]{1,0:T(1,128)}', space=vmem, size = 0x12000, scoped, tag = 'internal scratch']
  #allocation2 [shape = 'f32[16,32]{1,0:T(8,128)}', space=vmem, size = 0x2000, scoped, tag = 'scratch operand']
  #allocation3 [shape = 's32[1]{0}', space=sflag, size = 0x4, scoped, tag = 'scoped memory for attention_layer_forward.4']
  #allocation4 [shape = 'u8[512]{0}', space=smem, size = 0x200, scoped, tag = 'prefetched SMEM operand 0']
  #allocation5 [shape = 'u8[512]{0}', space=smem, size = 0x200, scoped, tag = 'prefetched SMEM operand 1']
  %s0 = inlined_call_operand.vmem [shape: s32[4], index: 0, kind: input, shape index: {}]
  %s1 = inlined_call_operand.vmem [shape: f32[4], index: 1, kind: input, shape index: {}]
  %s2 = inlined_call_operand.vmem [shape: bf16[2,8,32], index: 2, kind: input, shape index: {}]
  %s3 = inlined_call_operand.vmem [shape: bf16[2,8,32], index: 3, kind: output, shape index: {}]
  %s4 = sld [smem:[#allocation0]]
  $region37: #{attention_layer_forward.4} parent=0
    _
  %s6 = ssub.s32 1, %s4
  %s7 = scalar_select 0, %s6, %s4
  %s8 = sshll.u32 %s0, 4
  %s9 = int_to_ptr.vmem [resolvable:$true] %s8
  %11 = dma.vmem_to_smem %s9, 16, [#allocation4], [#allocation3]
  %s12 = sshll.u32 %s1, 4
  %s13 = int_to_ptr.vmem [resolvable:$true] %s12
  %15 = dma.vmem_to_smem %s13, 16, [#allocation5], [#allocation3]
  %16 = dma.done [#allocation3], 32
  %17 = sfence
  loop: start=0, step=1, limit=4
  $region2: #{attention_layer_forward.4} parent=0 // loop_pre_header
    _
  $region3: #{attention_layer_forward.4} parent=0 // loop_header
    %s19 = sphi 0, %s23
    %p20 = scmp.ge.s32.totalorder %s19, 4
    %s26 = sphi 0, %s38
    %s27 = sphi 0, %s34
    %s28 = sphi 0, %s26
    %s29 = sphi 0, %s27
    %s30 = sphi 0, %s28
    %s31 = sphi 0, %s29
    %s43 = sphi 0, %s45
    %s46 = sphi 0, %s43
    %s47 = sphi 0, %s46
    %s63 = sphi 0, %s47
    %s71 = sphi 0, %s73
    %s74 = sphi 0, %s71
    %s75 = sphi 0, %s74
    %s91 = sphi 0, %s75
  $region4: #{attention_layer_forward.4} parent=0 // loop_header_branch
    %22 = sbr.rel (%p20) target = $region8
  $region5: #{attention_layer_forward.4} parent=0 // loop_body
    %s24 = ssub.s32 %s19, 1
    %s25 = ssub.s32 %s19, 2
    %s32 = sadd.s32 1, %s27
    %p33 = scmp.ge.s32.totalorder %s32, 1
    %s34 = scalar_select %p33, 0, %s32
    %s35 = sadd.s32 1, %s26
    %s36 = scalar_select %p33, %s35, %s26
    %p37 = scmp.ge.s32.totalorder %s36, 2
    %s38 = scalar_select %p37, 0, %s36
    %s39 = ssub.s32 %s26, %s38
    %s40 = ssub.s32 %s27, %s34
    %s41 = sor.u32 %s39, %s40
    %p42 = scmp.eq.s32.totalorder %s41, 0
    %s44 = sadd.s32 %s43, 1
    %s45 = scalar_select %p42, %s43, %s44
    %p48 = pneg %p42
    %p49 = scmp.eq.s32.totalorder %s19, 1
    %p50 = por %p48, %p49
    %p51 = scmp.ne.s32.totalorder %s43, %s46
    %p52 = scmp.eq.s32.totalorder %s19, 0
    %p53 = por %p51, %p52
    %p54 = scmp.ne.s32.totalorder %s43, %s46
    %p55 = scmp.eq.s32.totalorder %s24, 1
    %p56 = por %p54, %p55
    %p57 = scmp.ne.s32.totalorder %s46, %s47
    %p58 = scmp.eq.s32.totalorder %s24, 0
    %p59 = por %p57, %p58
    %p60 = scmp.ne.s32.totalorder %s46, %s47
    %p61 = scmp.eq.s32.totalorder %s25, 1
    %p62 = por %p60, %p61
    %p64 = scmp.ne.s32.totalorder %s47, %s63
    %p65 = scmp.eq.s32.totalorder %s25, 0
    %p66 = por %p64, %p65
    %s67 = ssub.s32 %s26, %s38
    %s68 = ssub.s32 %s27, %s34
    %s69 = sor.u32 %s67, %s68
    %p70 = scmp.eq.s32.totalorder %s69, 0
    %s72 = sadd.s32 %s71, 1
    %s73 = scalar_select %p70, %s71, %s72
    %p76 = pneg %p70
    %p77 = scmp.eq.s32.totalorder %s19, 1
    %p78 = por %p76, %p77
    %p79 = scmp.ne.s32.totalorder %s71, %s74
    %p80 = scmp.eq.s32.totalorder %s19, 0
    %p81 = por %p79, %p80
    %p82 = scmp.ne.s32.totalorder %s71, %s74
    %p83 = scmp.eq.s32.totalorder %s24, 1
    %p84 = por %p82, %p83
    %p85 = scmp.ne.s32.totalorder %s74, %s75
    %p86 = scmp.eq.s32.totalorder %s24, 0
    %p87 = por %p85, %p86
    %p88 = scmp.ne.s32.totalorder %s74, %s75
    %p89 = scmp.eq.s32.totalorder %s25, 1
    %p90 = por %p88, %p89
    %p92 = scmp.ne.s32.totalorder %s75, %s91
    %p93 = scmp.eq.s32.totalorder %s25, 0
    %p94 = por %p92, %p93
    %p95 = scmp.le.s32.totalorder 1, %s19
    %p96 = scmp.lt.s32.totalorder %s19, 3
    %p97 = pnand %p95, %p96
    %p98 = pneg %p97
    // Predicated region
    $region9: #{attention_layer_forward.4} parent=5 // pred_check
      _
    $region10: #{attention_layer_forward.4} parent=5 // pred_check_branch
      %100 = sbr.rel (%p97) target = $region12
    $region11: #{attention_layer_forward.4} parent=5 // pred_region
      %s101 = ssub.s32 %s19, 1
    $region12: #{attention_layer_forward.4} parent=5 // pred_fallthru
      _
    %p102 = scmp.lt.s32.totalorder %s19, 2
    // Predicated region
    $region13: #{attention_layer_forward.4} parent=5 // pred_check
      %p103 = pneg %p102
    $region14: #{attention_layer_forward.4} parent=5 // pred_check_branch
      %105 = sbr.rel (%p103) target = $region16
    $region15: #{attention_layer_forward.4} parent=5 // pred_region
      // Predicated region
      $region17: #{attention_layer_forward.4} parent=15 // pred_check
        %p106 = pneg %p53
      $region18: #{attention_layer_forward.4} parent=15 // pred_check_branch
        %108 = sbr.rel (%p106) target = $region20
      $region19: #{attention_layer_forward.4} parent=15 // pred_region
        %p109 = scmp.lt.s32.totalorder %s26, 1
        %s110 = scalar_select %p109, %s26, 1
        %p111 = scmp.lt.s32.totalorder %s27, 0
        %s112 = scalar_select %p111, %s27, 0
        %s113 = sadd.s32 %s112, %s110
        %s114 = smul.addr %s113, 4
        %s115 = scalar_lea.vmem %s2, %s114
      $region20: #{attention_layer_forward.4} parent=15 // pred_fallthru
        _
    $region16: #{attention_layer_forward.4} parent=5 // pred_fallthru
      _
    %p116 = scmp.le.s32.totalorder 1, %s19
    %p117 = scmp.lt.s32.totalorder %s19, 3
    %p118 = pnand %p116, %p117
    %p119 = pneg %p118
    // Predicated region
    $region21: #{attention_layer_forward.4} parent=5 // pred_check
      _
    $region22: #{attention_layer_forward.4} parent=5 // pred_check_branch
      %121 = sbr.rel (%p118) target = $region24
    $region23: #{attention_layer_forward.4} parent=5 // pred_region
      %s122 = ssub.s32 %s19, 1
      %p123 = scmp.lt.s32.totalorder %s28, 1
      %s124 = scalar_select %p123, %s28, 1
      %p125 = scmp.lt.s32.totalorder %s29, 0
      %s126 = scalar_select %p125, %s29, 0
      %s127 = sadd.s32 %s126, %s124
      %s128 = smul.addr %s127, 4
      %s129 = scalar_lea.vmem %s2, %s128
      %p130 = pneg %p59
      %p131 = pneg %p56
      %p132 = pneg %p87
      %p133 = pneg %p84
      %p134 = scmp.lt.s32.totalorder %s28, 1
      %s135 = scalar_select %p134, %s28, 1
      %p136 = scmp.lt.s32.totalorder %s29, 0
      %s137 = scalar_select %p136, %s29, 0
      %s138 = sadd.s32 %s137, %s135
      %s139 = smul.addr %s138, 4
      %s140 = scalar_lea.vmem %s3, %s139
      %p141 = scmp.lt.s32.totalorder %s28, 1
      %s142 = scalar_select %p141, %s28, 1
      %p143 = scmp.lt.s32.totalorder %s29, 0
      %s144 = scalar_select %p143, %s29, 0
      %s145 = sadd.s32 %s144, %s142
      %s146 = smul.addr %s145, 4
      %s147 = scalar_lea.vmem %s2, %s146
      %p148 = scmp.lt.s32.totalorder %s28, 1
      %s149 = scalar_select %p148, %s28, 1
      %p150 = scmp.lt.s32.totalorder %s29, 0
      %s151 = scalar_select %p150, %s29, 0
      %s152 = sadd.s32 %s151, %s149
      %s153 = smul.addr %s152, 4
      %s154 = scalar_lea.vmem %s3, %s153
      %v155 = vld [vmem:[%s147] sm:$0xf]
      %v156 = vunpack.c.l.bf16 %v155
      %vm157 = vcmask 261120
      %158 = vst.msk [vmem:[#allocation2] sm:$0xff] %vm157, %v156
      %159 = vst.msk [vmem:[#allocation2 + $0x8] sm:$0xff] %vm157, %v156
      %s160 = smul.u32 %s28, 2
      %s161 = sld [smem:[#allocation4 + %s160]]
      %s162 = sld [smem:[#allocation5 + %s160]]
      %s163 = scalar_lea.vmem [#allocation2], %s161
      %v164 = vld [vmem:[%s163] sm:$0xff]
      %v165 = vstv %s162
      %v166 = vmul.f32 %v165, %v164
      %s167 = sadd.s32 %s160, 1
      %s168 = sld [smem:[#allocation4 + %s167]]
      %s169 = sld [smem:[#allocation5 + %s167]]
      %s170 = scalar_lea.vmem [#allocation2], %s168
      %v171 = vld [vmem:[%s170] sm:$0xff]
      %v172 = vstv %s169
      %v173 = vmul.f32 %v172, %v171
      %v174 = vadd.f32 %v166, %v173
      %v175 = vpack.c.bf16 %v174, %v174
      %vm176 = vcmask 257024
      %177 = vst.msk [vmem:[%s154] sm:$0xf] %vm176, %v175
      %p178 = scmp.lt.s32.totalorder %s28, 1
      %s179 = scalar_select %p178, %s28, 1
      %p180 = scmp.lt.s32.totalorder %s29, 0
      %s181 = scalar_select %p180, %s29, 0
      %s182 = sadd.s32 %s181, %s179
      %s183 = smul.addr %s182, 4
      %s184 = scalar_lea.vmem %s3, %s183
      // Predicated region
      $region25: #{attention_layer_forward.4} parent=23 // pred_check
        %p185 = pneg %p84
      $region26: #{attention_layer_forward.4} parent=23 // pred_check_branch
        %187 = sbr.rel (%p185) target = $region28
      $region27: #{attention_layer_forward.4} parent=23 // pred_region
        _
      $region28: #{attention_layer_forward.4} parent=23 // pred_fallthru
        _
    $region24: #{attention_layer_forward.4} parent=5 // pred_fallthru
      _
    %p188 = scmp.le.s32.totalorder 2, %s19
    // Predicated region
    $region29: #{attention_layer_forward.4} parent=5 // pred_check
      %p189 = pneg %p188
    $region30: #{attention_layer_forward.4} parent=5 // pred_check_branch
      %191 = sbr.rel (%p189) target = $region32
    $region31: #{attention_layer_forward.4} parent=5 // pred_region
      %s192 = ssub.s32 %s19, 2
      // Predicated region
      $region33: #{attention_layer_forward.4} parent=31 // pred_check
        %p193 = pneg %p90
      $region34: #{attention_layer_forward.4} parent=31 // pred_check_branch
        %195 = sbr.rel (%p193) target = $region36
      $region35: #{attention_layer_forward.4} parent=31 // pred_region
        %p196 = scmp.lt.s32.totalorder %s30, 1
        %s197 = scalar_select %p196, %s30, 1
        %p198 = scmp.lt.s32.totalorder %s31, 0
        %s199 = scalar_select %p198, %s31, 0
        %s200 = sadd.s32 %s199, %s197
        %s201 = smul.addr %s200, 4
        %s202 = scalar_lea.vmem %s3, %s201
      $region36: #{attention_layer_forward.4} parent=31 // pred_fallthru
        _
    $region32: #{attention_layer_forward.4} parent=5 // pred_fallthru
      _
  $region6: #{attention_layer_forward.4} parent=0 // loop_footer
    %s23 = sadd.s32 1, %s19
  $region7: #{attention_layer_forward.4} parent=0 // loop_footer_branch
    %18 = sbr.rel target = $region3
  $region8: #{attention_layer_forward.4} parent=0 // loop_exit
    _

</llo_original>
